<compile_context>
chip_gen: v6e
topology: v6e:2x2x1
jax: 0.10.0
libtpu: 0.0.40
codegen_flags: <defaults>
</compile_context>

<pallas_src>
import functools

import jax
import jax.numpy as jnp
from jax.experimental import pallas as pl
from jax.experimental.pallas import tpu as pltpu

H1 = 128
H2 = 256
LANE = 128


def _round_up(n: int, m: int) -> int:
    return (n + m - 1) // m * m


def _dqn_kernel(x_ref, w1_ref, b1_ref, w2_ref, b2_ref, w3_ref, b3_ref,
                o_ref, h1_ref, h2_ref):
    # Layer 1: (TB, Din) @ (Din, 128) — bf16 operands on the MXU, f32 accumulate.
    h1 = jnp.dot(x_ref[...], w1_ref[...], preferred_element_type=jnp.float32)
    h1_ref[...] = jnp.maximum(h1 + b1_ref[...], 0.0).astype(h1_ref.dtype)

    # Layer 2: (TB, 128) @ (128, 256) — h1 already bf16 in scratch.
    h2 = jnp.dot(h1_ref[...], w2_ref[...], preferred_element_type=jnp.float32)
    h2_ref[...] = jnp.maximum(h2 + b2_ref[...], 0.0).astype(h2_ref.dtype)

    # Layer 3: (TB, 256) @ (256, Dout_pad) — lane-dense (multiple-of-128) output.
    out = jnp.dot(h2_ref[...], w3_ref[...], preferred_element_type=jnp.float32)
    o_ref[...] = (out + b3_ref[...]).astype(o_ref.dtype)


@functools.partial(jax.jit, static_argnames=("tile_b",))
def dqn_forward(x, params, *, tile_b=512):
    """Run the fused DQN MLP kernel.

    x:      (B, input_dim) float32
    params: dict with w1 (Din,128), b1 (1,128), w2 (128,256), b2 (1,256),
            w3 (256,Dout), b3 (1,Dout)  — weights stored (in, out), i.e. the
            transpose of torch nn.Linear.weight, so the kernel does x @ W.
    """
    B, input_dim = x.shape
    output_dim = params["w3"].shape[1]
    out_pad = _round_up(max(output_dim, LANE), LANE)

    # Batch tiling: TB is a multiple of 8 sublanes; pad B up to a multiple of TB.
    TB = min(tile_b, _round_up(B, 8))
    B_pad = _round_up(B, TB)
    grid = (B_pad // TB,)

    bf16 = jnp.bfloat16
    f32 = jnp.float32

    # bf16 MXU operands (activations + weights); biases stay f32.
    x_p = jnp.pad(x.astype(bf16), ((0, B_pad - B), (0, 0)))
    w1 = params["w1"].astype(bf16)
    w2 = params["w2"].astype(bf16)
    w3 = jnp.pad(params["w3"], ((0, 0), (0, out_pad - output_dim))).astype(bf16)
    b1 = params["b1"].astype(f32)
    b2 = params["b2"].astype(f32)
    b3 = jnp.pad(params["b3"].astype(f32), ((0, 0), (0, out_pad - output_dim)))

    in_specs = [
        pl.BlockSpec((TB, input_dim), lambda i: (i, 0)),      # x: batch-tiled
        pl.BlockSpec((input_dim, H1), lambda i: (0, 0)),      # w1: resident
        pl.BlockSpec((1, H1), lambda i: (0, 0)),              # b1
        pl.BlockSpec((H1, H2), lambda i: (0, 0)),             # w2
        pl.BlockSpec((1, H2), lambda i: (0, 0)),              # b2
        pl.BlockSpec((H2, out_pad), lambda i: (0, 0)),        # w3 (padded)
        pl.BlockSpec((1, out_pad), lambda i: (0, 0)),         # b3 (padded)
    ]
    out_spec = pl.BlockSpec((TB, out_pad), lambda i: (i, 0))

    flops = 2 * B_pad * (input_dim * H1 + H1 * H2 + H2 * out_pad)
    bytes_accessed = (
        B_pad * input_dim * 2                                   # x (bf16)
        + (input_dim * H1 + H1 * H2 + H2 * out_pad) * 2         # weights (bf16)
        + (H1 + H2 + out_pad) * 4                               # biases (f32)
        + B_pad * out_pad * 4                                   # out (f32)
    )

    out_padded = pl.pallas_call(
        _dqn_kernel,
        out_shape=jax.ShapeDtypeStruct((B_pad, out_pad), jnp.float32),
        grid=grid,
        in_specs=in_specs,
        out_specs=out_spec,
        scratch_shapes=[
            pltpu.VMEM((TB, H1), jnp.bfloat16),   # h1 (ReLU'd, next MXU operand)
            pltpu.VMEM((TB, H2), jnp.bfloat16),   # h2
        ],
        compiler_params=pltpu.CompilerParams(
            dimension_semantics=("parallel",),
        ),
        cost_estimate=pl.CostEstimate(
            flops=flops, transcendentals=0, bytes_accessed=bytes_accessed),
    )(x_p, w1, b1, w2, b2, w3, b3)

    return out_padded[:B, :output_dim]


def init_dqn_params(key, input_dim, output_dim):
    """PyTorch-like uniform fan-in init. Weights stored as (in, out)."""
    keys = jax.random.split(key, 6)

    def linear(kw, kb, fan_in, fan_out):
        bound = 1.0 / jnp.sqrt(jnp.float32(fan_in))
        w = jax.random.uniform(kw, (fan_in, fan_out), jnp.float32, -bound, bound)
        b = jax.random.uniform(kb, (1, fan_out), jnp.float32, -bound, bound)
        return w, b

    w1, b1 = linear(keys[0], keys[1], input_dim, H1)
    w2, b2 = linear(keys[2], keys[3], H1, H2)
    w3, b3 = linear(keys[4], keys[5], H2, output_dim)
    return {"w1": w1, "b1": b1, "w2": w2, "b2": b2, "w3": w3, "b3": b3}


def dqn_reference(x, params):
    """Reference with the same bf16 MXU-operand / f32-accumulate recipe."""
    bf16, f32 = jnp.bfloat16, jnp.float32
    h1 = jnp.maximum(
        jnp.dot(x.astype(bf16), params["w1"].astype(bf16),
                preferred_element_type=f32) + params["b1"], 0.0)
    h2 = jnp.maximum(
        jnp.dot(h1.astype(bf16), params["w2"].astype(bf16),
                preferred_element_type=f32) + params["b2"], 0.0)
    return jnp.dot(h2.astype(bf16), params["w3"].astype(bf16),
                   preferred_element_type=f32) + params["b3"]


if __name__ == "__main__":
    key = jax.random.PRNGKey(0)
    k_param, k_x = jax.random.split(key)

    batch = 2
    input_dim = 4    # CartPole-like state size
    output_dim = 6   # number of actions

    params = init_dqn_params(k_param, input_dim, output_dim)
    x = jax.random.normal(k_x, (batch, input_dim), jnp.float32)

    out = dqn_forward(x, params)
    jax.block_until_ready(out)

    ref = dqn_reference(x, params)
    assert out.shape == (batch, output_dim), out.shape
    assert jnp.allclose(out, ref, atol=1e-3, rtol=1e-3), "mismatch vs reference"

    print("KERNEL_OK")
</pallas_src>

<mosaic_0001>
module attributes {stable_mosaic.version = 11 : i64} {
  func.func @_dqn_kernel(%arg0: i32, %arg1: memref<8x4xbf16, #tpu.memory_space<vmem>>, %arg2: memref<4x128xbf16, #tpu.memory_space<vmem>>, %arg3: memref<1x128xf32, #tpu.memory_space<vmem>>, %arg4: memref<128x256xbf16, #tpu.memory_space<vmem>>, %arg5: memref<1x256xf32, #tpu.memory_space<vmem>>, %arg6: memref<256x128xbf16, #tpu.memory_space<vmem>>, %arg7: memref<1x128xf32, #tpu.memory_space<vmem>>, %arg8: memref<8x128xf32, #tpu.memory_space<vmem>>, %arg9: memref<8x128xbf16, #tpu.memory_space<vmem>>, %arg10: memref<8x256xbf16, #tpu.memory_space<vmem>>) attributes {dimension_semantics = [#tpu.dimension_semantics<parallel>], iteration_bounds = array<i64: 1>, scalar_prefetch = 0 : i64, scratch_operands = 2 : i64, tpu.core_type = #tpu.core_type<tc>, window_params = [{transform_indices = @transform_0, window_bounds = array<i64: 8, 4>}, {pipeline_mode = #tpu.pipeline_mode<synchronous>, transform_indices = @transform_1, window_bounds = array<i64: 4, 128>}, {pipeline_mode = #tpu.pipeline_mode<synchronous>, transform_indices = @transform_2, window_bounds = array<i64: 1, 128>}, {pipeline_mode = #tpu.pipeline_mode<synchronous>, transform_indices = @transform_3, window_bounds = array<i64: 128, 256>}, {pipeline_mode = #tpu.pipeline_mode<synchronous>, transform_indices = @transform_4, window_bounds = array<i64: 1, 256>}, {pipeline_mode = #tpu.pipeline_mode<synchronous>, transform_indices = @transform_5, window_bounds = array<i64: 256, 128>}, {pipeline_mode = #tpu.pipeline_mode<synchronous>, transform_indices = @transform_6, window_bounds = array<i64: 1, 128>}, {transform_indices = @transform_7, window_bounds = array<i64: 8, 128>}]} {
    %c0 = arith.constant 0 : index
    %c0_0 = arith.constant 0 : index
    %0 = vector.load %arg1[%c0, %c0_0] : memref<8x4xbf16, #tpu.memory_space<vmem>>, vector<8x4xbf16>
    %c0_1 = arith.constant 0 : index
    %c0_2 = arith.constant 0 : index
    %1 = vector.load %arg2[%c0_1, %c0_2] : memref<4x128xbf16, #tpu.memory_space<vmem>>, vector<4x128xbf16>
    %cst = arith.constant dense<0.000000e+00> : vector<8x128xf32>
    %2 = tpu.matmul %0, %1, %cst {dimension_numbers = #tpu.dot_dimension_numbers<[1], [0], [0], [1], [0, 0, 1, 1], [], []>} : vector<8x4xbf16>, vector<4x128xbf16>, vector<8x128xf32> -> vector<8x128xf32>
    %c0_3 = arith.constant 0 : index
    %c0_4 = arith.constant 0 : index
    %3 = vector.load %arg3[%c0_3, %c0_4] : memref<1x128xf32, #tpu.memory_space<vmem>>, vector<1x128xf32>
    %4 = vector.broadcast %3 : vector<1x128xf32> to vector<8x128xf32>
    %5 = arith.addf %2, %4 : vector<8x128xf32>
    %cst_5 = arith.constant 0.000000e+00 : f32
    %6 = vector.broadcast %cst_5 : f32 to vector<8x128xf32>
    %7 = arith.maximumf %5, %6 : vector<8x128xf32>
    %8 = arith.truncf %7 : vector<8x128xf32> to vector<8x128xbf16>
    %c0_6 = arith.constant 0 : index
    %c0_7 = arith.constant 0 : index
    %9 = vector.load %arg9[%c0_6, %c0_7] : memref<8x128xbf16, #tpu.memory_space<vmem>>, vector<8x128xbf16>
    tpu.vector_store %arg9[%c0_6, %c0_7], %8 {strides = array<i32>} : memref<8x128xbf16, #tpu.memory_space<vmem>>, vector<8x128xbf16>,
    %c0_8 = arith.constant 0 : index
    %c0_9 = arith.constant 0 : index
    %10 = vector.load %arg9[%c0_8, %c0_9] : memref<8x128xbf16, #tpu.memory_space<vmem>>, vector<8x128xbf16>
    %c0_10 = arith.constant 0 : index
    %c0_11 = arith.constant 0 : index
    %11 = vector.load %arg4[%c0_10, %c0_11] : memref<128x256xbf16, #tpu.memory_space<vmem>>, vector<128x256xbf16>
    %cst_12 = arith.constant dense<0.000000e+00> : vector<8x256xf32>
    %12 = tpu.matmul %10, %11, %cst_12 {dimension_numbers = #tpu.dot_dimension_numbers<[1], [0], [0], [1], [0, 0, 1, 1], [], []>} : vector<8x128xbf16>, vector<128x256xbf16>, vector<8x256xf32> -> vector<8x256xf32>
    %c0_13 = arith.constant 0 : index
    %c0_14 = arith.constant 0 : index
    %13 = vector.load %arg5[%c0_13, %c0_14] : memref<1x256xf32, #tpu.memory_space<vmem>>, vector<1x256xf32>
    %14 = vector.broadcast %13 : vector<1x256xf32> to vector<8x256xf32>
    %15 = arith.addf %12, %14 : vector<8x256xf32>
    %cst_15 = arith.constant 0.000000e+00 : f32
    %16 = vector.broadcast %cst_15 : f32 to vector<8x256xf32>
    %17 = arith.maximumf %15, %16 : vector<8x256xf32>
    %18 = arith.truncf %17 : vector<8x256xf32> to vector<8x256xbf16>
    %c0_16 = arith.constant 0 : index
    %c0_17 = arith.constant 0 : index
    %19 = vector.load %arg10[%c0_16, %c0_17] : memref<8x256xbf16, #tpu.memory_space<vmem>>, vector<8x256xbf16>
    tpu.vector_store %arg10[%c0_16, %c0_17], %18 {strides = array<i32>} : memref<8x256xbf16, #tpu.memory_space<vmem>>, vector<8x256xbf16>,
    %c0_18 = arith.constant 0 : index
    %c0_19 = arith.constant 0 : index
    %20 = vector.load %arg10[%c0_18, %c0_19] : memref<8x256xbf16, #tpu.memory_space<vmem>>, vector<8x256xbf16>
    %c0_20 = arith.constant 0 : index
    %c0_21 = arith.constant 0 : index
    %21 = vector.load %arg6[%c0_20, %c0_21] : memref<256x128xbf16, #tpu.memory_space<vmem>>, vector<256x128xbf16>
    %cst_22 = arith.constant dense<0.000000e+00> : vector<8x128xf32>
    %22 = tpu.matmul %20, %21, %cst_22 {dimension_numbers = #tpu.dot_dimension_numbers<[1], [0], [0], [1], [0, 0, 1, 1], [], []>} : vector<8x256xbf16>, vector<256x128xbf16>, vector<8x128xf32> -> vector<8x128xf32>
    %c0_23 = arith.constant 0 : index
    %c0_24 = arith.constant 0 : index
    %23 = vector.load %arg7[%c0_23, %c0_24] : memref<1x128xf32, #tpu.memory_space<vmem>>, vector<1x128xf32>
    %24 = vector.broadcast %23 : vector<1x128xf32> to vector<8x128xf32>
    %25 = arith.addf %22, %24 : vector<8x128xf32>
    %c0_25 = arith.constant 0 : index
    %c0_26 = arith.constant 0 : index
    %26 = vector.load %arg8[%c0_25, %c0_26] : memref<8x128xf32, #tpu.memory_space<vmem>>, vector<8x128xf32>
    tpu.vector_store %arg8[%c0_25, %c0_26], %25 {strides = array<i32>} : memref<8x128xf32, #tpu.memory_space<vmem>>, vector<8x128xf32>,
    return
  }
  func.func @transform_0(%arg0: i32) -> (i32, i32) {
    %c0_i32 = arith.constant 0 : i32
    %c0_i32_0 = arith.constant 0 : i32
    return %arg0, %c0_i32 : i32, i32
  }
  func.func @transform_1(%arg0: i32) -> (i32, i32) {
    %c0_i32 = arith.constant 0 : i32
    %c0_i32_0 = arith.constant 0 : i32
    %c0_i32_1 = arith.constant 0 : i32
    return %c0_i32, %c0_i32_0 : i32, i32
  }
  func.func @transform_2(%arg0: i32) -> (i32, i32) {
    %c0_i32 = arith.constant 0 : i32
    %c0_i32_0 = arith.constant 0 : i32
    %c0_i32_1 = arith.constant 0 : i32
    return %c0_i32, %c0_i32_0 : i32, i32
  }
  func.func @transform_3(%arg0: i32) -> (i32, i32) {
    %c0_i32 = arith.constant 0 : i32
    %c0_i32_0 = arith.constant 0 : i32
    %c0_i32_1 = arith.constant 0 : i32
    return %c0_i32, %c0_i32_0 : i32, i32
  }
  func.func @transform_4(%arg0: i32) -> (i32, i32) {
    %c0_i32 = arith.constant 0 : i32
    %c0_i32_0 = arith.constant 0 : i32
    %c0_i32_1 = arith.constant 0 : i32
    return %c0_i32, %c0_i32_0 : i32, i32
  }
  func.func @transform_5(%arg0: i32) -> (i32, i32) {
    %c0_i32 = arith.constant 0 : i32
    %c0_i32_0 = arith.constant 0 : i32
    %c0_i32_1 = arith.constant 0 : i32
    return %c0_i32, %c0_i32_0 : i32, i32
  }
  func.func @transform_6(%arg0: i32) -> (i32, i32) {
    %c0_i32 = arith.constant 0 : i32
    %c0_i32_0 = arith.constant 0 : i32
    %c0_i32_1 = arith.constant 0 : i32
    return %c0_i32, %c0_i32_0 : i32, i32
  }
  func.func @transform_7(%arg0: i32) -> (i32, i32) {
    %c0_i32 = arith.constant 0 : i32
    %c0_i32_0 = arith.constant 0 : i32
    return %arg0, %c0_i32 : i32, i32
  }
}

</mosaic_0001>

<llo_original>
// kernel: dqn_forward.1
$region0: #{dqn_forward.1}
  #allocation0 [shape = 'u32[]', space=smem, size = 0x4, offset = 0x4, fixed_abs, tag = 'smem constant byte address 0x4 - core index']
  #allocation1 [shape = 'u32[144,128]{1,0:T(1,128)}', space=vmem, size = 0x12000, scoped, tag = 'internal scratch']
  #allocation2 [shape = 'bf16[8,128]{1,0:T(8,128)(2,1)}', space=vmem, size = 0x800, scoped, tag = 'scratch operand']
  #allocation3 [shape = 'bf16[8,256]{1,0:T(8,128)(2,1)}', space=vmem, size = 0x1000, scoped, tag = 'scratch operand']
  %s0 = inlined_call_operand.vmem [shape: bf16[8,4], index: 0, kind: input, shape index: {}]
  %s1 = inlined_call_operand.vmem [shape: bf16[4,128], index: 1, kind: input, shape index: {}]
  %s2 = inlined_call_operand.vmem [shape: f32[1,128], index: 2, kind: input, shape index: {}]
  %s3 = inlined_call_operand.vmem [shape: bf16[128,256], index: 3, kind: input, shape index: {}]
  %s4 = inlined_call_operand.vmem [shape: f32[1,256], index: 4, kind: input, shape index: {}]
  %s5 = inlined_call_operand.vmem [shape: bf16[256,128], index: 5, kind: input, shape index: {}]
  %s6 = inlined_call_operand.vmem [shape: f32[1,128], index: 6, kind: input, shape index: {}]
  %s7 = inlined_call_operand.vmem [shape: f32[8,128], index: 7, kind: output, shape index: {}]
  %s8 = sld [smem:[#allocation0]]
  $region38: #{dqn_forward.1} parent=0
    _
  %s10 = ssub.s32 1, %s8
  %s11 = scalar_select 0, %s10, %s8
  // Predicated region
  $region2: #{dqn_forward.1} parent=0 // pred_check
    _
  $region3: #{dqn_forward.1} parent=0 // pred_check_branch
    %13 = sbr.rel (0) target = $region5
  $region4: #{dqn_forward.1} parent=0 // pred_region
    _
  $region5: #{dqn_forward.1} parent=0 // pred_fallthru
    _
  // Predicated region
  $region6: #{dqn_forward.1} parent=0 // pred_check
    _
  $region7: #{dqn_forward.1} parent=0 // pred_check_branch
    %15 = sbr.rel (0) target = $region9
  $region8: #{dqn_forward.1} parent=0 // pred_region
    _
  $region9: #{dqn_forward.1} parent=0 // pred_fallthru
    _
  // Predicated region
  $region10: #{dqn_forward.1} parent=0 // pred_check
    _
  $region11: #{dqn_forward.1} parent=0 // pred_check_branch
    %17 = sbr.rel (0) target = $region13
  $region12: #{dqn_forward.1} parent=0 // pred_region
    _
  $region13: #{dqn_forward.1} parent=0 // pred_fallthru
    _
  // Predicated region
  $region14: #{dqn_forward.1} parent=0 // pred_check
    _
  $region15: #{dqn_forward.1} parent=0 // pred_check_branch
    %19 = sbr.rel (0) target = $region17
  $region16: #{dqn_forward.1} parent=0 // pred_region
    _
  $region17: #{dqn_forward.1} parent=0 // pred_fallthru
    _
  // Predicated region
  $region18: #{dqn_forward.1} parent=0 // pred_check
    _
  $region19: #{dqn_forward.1} parent=0 // pred_check_branch
    %21 = sbr.rel (0) target = $region21
  $region20: #{dqn_forward.1} parent=0 // pred_region
    _
  $region21: #{dqn_forward.1} parent=0 // pred_fallthru
    _
  // Predicated region
  $region22: #{dqn_forward.1} parent=0 // pred_check
    _
  $region23: #{dqn_forward.1} parent=0 // pred_check_branch
    %23 = sbr.rel (0) target = $region25
  $region24: #{dqn_forward.1} parent=0 // pred_region
    _
  $region25: #{dqn_forward.1} parent=0 // pred_fallthru
    _
  // Predicated region
  $region26: #{dqn_forward.1} parent=0 // pred_check
    _
  $region27: #{dqn_forward.1} parent=0 // pred_check_branch
    %25 = sbr.rel (0) target = $region29
  $region28: #{dqn_forward.1} parent=0 // pred_region
    _
  $region29: #{dqn_forward.1} parent=0 // pred_fallthru
    _
  %v27 = vld [vmem:[%s0] sm:$0xf]
  %v28 = vld [vmem:[%s1] sm:$0x3]
  %v29 = vld [vmem:[%s2] sm:$0x1]
  %v31 = vlaneseq
  %v32 = vshrl.u32 %v31, 7
  %v33 = vsub.s32 0, %v32
  %v34 = vrot.slane %v29, %v33
  %vm36 = vcmask 31744
  %v38 = vsel %vm36, %v27, 0
  %vm40 = vcmask 1041408
  %v42 = vsel %vm40, %v28, 0
  %44 = vmatprep.subr.bf16.mxu0 0
  %45 = vmatpush1.bf16.msra.mxu0 0
  %46 = vmatprep.subr.bf16.mxu0 0
  %47 = vmatpush1.bf16.msra.mxu0 0
  %48 = vmatprep.subr.bf16.mxu0 0
  %49 = vmatpush1.bf16.msra.mxu0 0
  %50 = vmatprep.subr.bf16.mxu0 0
  %51 = vmatpush1.bf16.msra.mxu0 0
  %52 = vmatprep.subr.bf16.mxu0 0
  %53 = vmatpush1.bf16.msra.mxu0 0
  %54 = vmatprep.subr.bf16.mxu0 0
  %55 = vmatpush1.bf16.msra.mxu0 0
  %56 = vmatprep.subr.bf16.mxu0 0
  %57 = vmatpush1.bf16.msra.mxu0 0
  %58 = vmatprep.subr.bf16.mxu0 0
  %59 = vmatpush1.bf16.msra.mxu0 %v42
  %60 = vmatprep.subr.bf16.mxu0 0
  %61 = vmatpush2.bf16.msra.mxu0 0
  %62 = vmatprep.subr.bf16.mxu0 0
  %63 = vmatpush2.bf16.msra.mxu0 0
  %64 = vmatprep.subr.bf16.mxu0 0
  %65 = vmatpush2.bf16.msra.mxu0 0
  %66 = vmatprep.subr.bf16.mxu0 0
  %67 = vmatpush2.bf16.msra.mxu0 0
  %68 = vmatprep.subr.bf16.mxu0 0
  %69 = vmatpush2.bf16.msra.mxu0 0
  %70 = vmatprep.subr.bf16.mxu0 0
  %71 = vmatpush2.bf16.msra.mxu0 0
  %72 = vmatprep.subr.bf16.mxu0 0
  %73 = vmatpush2.bf16.msra.mxu0 0
  %74 = vmatprep.subr.bf16.mxu0 0
  %75 = vmatpush2.bf16.msra.mxu0 0
  %76 = vmatprep.mubr.bf16.mxu0 0
  %77 = vmatmul.mubr.bf16.gmra.mxu0 %v38
  %v78 = vpop.f32.mrf.mxu0
  %v79 = vadd.f32 %v34, %v78
  %v80 = vpop.f32.mrf.mxu0
  %v81 = vpop.f32.mrf.mxu0
  %v82 = vpop.f32.mrf.mxu0
  %83 = vdwg.mxu0
  %v84 = vmax.f32 %v79, 0.0
  %v85 = vpack.c.bf16 %v84, %v84
  %86 = vst [vmem:[#allocation2] sm:$0xf] %v85
  %v87 = vld [vmem:[#allocation2] sm:$0xf]
  %v88 = vld [vmem:[%s3] sm:$0xff]
  %v89 = vld [vmem:[%s3 + $0x8] sm:$0xff]
  %v90 = vld [vmem:[%s3 + $0x10] sm:$0xff]
  %v91 = vld [vmem:[%s3 + $0x18] sm:$0xff]
  %v92 = vld [vmem:[%s3 + $0x20] sm:$0xff]
  %v93 = vld [vmem:[%s3 + $0x28] sm:$0xff]
  %v94 = vld [vmem:[%s3 + $0x30] sm:$0xff]
  %v95 = vld [vmem:[%s3 + $0x38] sm:$0xff]
  %v96 = vld [vmem:[%s3 + $0x40] sm:$0xff]
  %v97 = vld [vmem:[%s3 + $0x48] sm:$0xff]
  %v98 = vld [vmem:[%s3 + $0x50] sm:$0xff]
  %v99 = vld [vmem:[%s3 + $0x58] sm:$0xff]
  %v100 = vld [vmem:[%s3 + $0x60] sm:$0xff]
  %v101 = vld [vmem:[%s3 + $0x68] sm:$0xff]
  %v102 = vld [vmem:[%s3 + $0x70] sm:$0xff]
  %v103 = vld [vmem:[%s3 + $0x78] sm:$0xff]
  %v104 = vld [vmem:[%s4] sm:$0x3]
  %v106 = vlaneseq
  %v107 = vshrl.u32 %v106, 7
  %v108 = vsub.s32 0, %v107
  %v109 = vrot.slane %v104, %v108
  %v110 = vlaneseq
  %v111 = vshrl.u32 %v110, 7
  %v112 = vsub.s32 1, %v111
  %v113 = vrot.slane %v104, %v112
  %v132 = vunpack.c.l.b16 %v88
  %v133 = vunpack.c.h.b16 %v88
  %v134 = vunpack.c.l.b16 %v89
  %v135 = vunpack.c.h.b16 %v89
  %v136 = vunpack.c.l.b16 %v90
  %v137 = vunpack.c.h.b16 %v90
  %v138 = vunpack.c.l.b16 %v91
  %v139 = vunpack.c.h.b16 %v91
  %v140 = vunpack.c.l.b16 %v92
  %v141 = vunpack.c.h.b16 %v92
  %v142 = vunpack.c.l.b16 %v93
  %v143 = vunpack.c.h.b16 %v93
  %v144 = vunpack.c.l.b16 %v94
  %v145 = vunpack.c.h.b16 %v94
  %v146 = vunpack.c.l.b16 %v95
  %v147 = vunpack.c.h.b16 %v95
  %v148 = vunpack.c.l.b16 %v96
  %v149 = vunpack.c.h.b16 %v96
  %v150 = vunpack.c.l.b16 %v97
  %v151 = vunpack.c.h.b16 %v97
  %v152 = vunpack.c.l.b16 %v98
  %v153 = vunpack.c.h.b16 %v98
  %v154 = vunpack.c.l.b16 %v99
  %v155 = vunpack.c.h.b16 %v99
  %v156 = vunpack.c.l.b16 %v100
  %v157 = vunpack.c.h.b16 %v100
  %v158 = vunpack.c.l.b16 %v101
  %v159 = vunpack.c.h.b16 %v101
  %v160 = vunpack.c.l.b16 %v102
  %v161 = vunpack.c.h.b16 %v102
  %v162 = vunpack.c.l.b16 %v103
  %v163 = vunpack.c.h.b16 %v103
  %v164 = vpack.c.b16 %v134, %v132
  %v165 = vpack.c.b16 %v135, %v133
  %v166 = vpack.c.b16 %v138, %v136
  %v167 = vpack.c.b16 %v139, %v137
  %v168 = vpack.c.b16 %v142, %v140
  %v169 = vpack.c.b16 %v143, %v141
  %v170 = vpack.c.b16 %v146, %v144
  %v171 = vpack.c.b16 %v147, %v145
  %v172 = vpack.c.b16 %v150, %v148
  %v173 = vpack.c.b16 %v151, %v149
  %v174 = vpack.c.b16 %v154, %v152
  %v175 = vpack.c.b16 %v155, %v153
  %v176 = vpack.c.b16 %v158, %v156
  %v177 = vpack.c.b16 %v159, %v157
  %v178 = vpack.c.b16 %v162, %v160
  %v179 = vpack.c.b16 %v163, %v161
  %196 = vmatprep.subr.bf16.mxu0 %v179
  %197 = vmatpush1.bf16.msra.mxu0 %v178
  %198 = vmatprep.subr.bf16.mxu0 %v177
  %199 = vmatpush1.bf16.msra.mxu0 %v176
  %200 = vmatprep.subr.bf16.mxu0 %v175
  %201 = vmatpush1.bf16.msra.mxu0 %v174
  %202 = vmatprep.subr.bf16.mxu0 %v173
  %203 = vmatpush1.bf16.msra.mxu0 %v172
  %204 = vmatprep.subr.bf16.mxu0 %v171
  %205 = vmatpush1.bf16.msra.mxu0 %v170
  %206 = vmatprep.subr.bf16.mxu0 %v169
  %207 = vmatpush1.bf16.msra.mxu0 %v168
  %208 = vmatprep.subr.bf16.mxu0 %v167
  %209 = vmatpush1.bf16.msra.mxu0 %v166
  %210 = vmatprep.subr.bf16.mxu0 %v165
  %211 = vmatpush1.bf16.msra.mxu0 %v164
  %212 = vmatprep.subr.bf16.mxu0 0
  %213 = vmatpush2.bf16.msra.mxu0 0
  %214 = vmatprep.subr.bf16.mxu0 0
  %215 = vmatpush2.bf16.msra.mxu0 0
  %216 = vmatprep.subr.bf16.mxu0 0
  %217 = vmatpush2.bf16.msra.mxu0 0
  %218 = vmatprep.subr.bf16.mxu0 0
  %219 = vmatpush2.bf16.msra.mxu0 0
  %220 = vmatprep.subr.bf16.mxu0 0
  %221 = vmatpush2.bf16.msra.mxu0 0
  %222 = vmatprep.subr.bf16.mxu0 0
  %223 = vmatpush2.bf16.msra.mxu0 0
  %224 = vmatprep.subr.bf16.mxu0 0
  %225 = vmatpush2.bf16.msra.mxu0 0
  %226 = vmatprep.subr.bf16.mxu0 0
  %227 = vmatpush2.bf16.msra.mxu0 0
  %228 = vmatprep.mubr.bf16.mxu0 0
  %229 = vmatmul.mubr.bf16.gmra.mxu0 %v87
  %v230 = vpop.f32.mrf.mxu0
  %v231 = vadd.f32 %v109, %v230
  %v232 = vpop.f32.mrf.mxu0
  %v233 = vadd.f32 %v113, %v232
  %v234 = vpop.f32.mrf.mxu0
  %v235 = vpop.f32.mrf.mxu0
  %236 = vdwg.mxu0
  %v237 = vmax.f32 %v231, 0.0
  %v238 = vmax.f32 %v233, 0.0
  %v239 = vpack.c.bf16 %v237, %v237
  %v240 = vpack.c.bf16 %v238, %v238
  %v243 = vunpack.c.l.b16 %v239
  %v244 = vunpack.c.l.b16 %v240
  %v245 = vpack.c.b16 %v244, %v243
  %247 = vst [vmem:[#allocation3] sm:$0xff] %v245
  %v248 = vld [vmem:[#allocation3] sm:$0xff]
  %v249 = vld [vmem:[%s5] sm:$0xf]
  %v250 = vld [vmem:[%s5 + $0x4] sm:$0xf]
  %v251 = vld [vmem:[%s5 + $0x8] sm:$0xf]
  %v252 = vld [vmem:[%s5 + $0xc] sm:$0xf]
  %v253 = vld [vmem:[%s5 + $0x10] sm:$0xf]
  %v254 = vld [vmem:[%s5 + $0x14] sm:$0xf]
  %v255 = vld [vmem:[%s5 + $0x18] sm:$0xf]
  %v256 = vld [vmem:[%s5 + $0x1c] sm:$0xf]
  %v257 = vld [vmem:[%s5 + $0x20] sm:$0xf]
  %v258 = vld [vmem:[%s5 + $0x24] sm:$0xf]
  %v259 = vld [vmem:[%s5 + $0x28] sm:$0xf]
  %v260 = vld [vmem:[%s5 + $0x2c] sm:$0xf]
  %v261 = vld [vmem:[%s5 + $0x30] sm:$0xf]
  %v262 = vld [vmem:[%s5 + $0x34] sm:$0xf]
  %v263 = vld [vmem:[%s5 + $0x38] sm:$0xf]
  %v264 = vld [vmem:[%s5 + $0x3c] sm:$0xf]
  %v265 = vld [vmem:[%s5 + $0x40] sm:$0xf]
  %v266 = vld [vmem:[%s5 + $0x44] sm:$0xf]
  %v267 = vld [vmem:[%s5 + $0x48] sm:$0xf]
  %v268 = vld [vmem:[%s5 + $0x4c] sm:$0xf]
  %v269 = vld [vmem:[%s5 + $0x50] sm:$0xf]
  %v270 = vld [vmem:[%s5 + $0x54] sm:$0xf]
  %v271 = vld [vmem:[%s5 + $0x58] sm:$0xf]
  %v272 = vld [vmem:[%s5 + $0x5c] sm:$0xf]
  %v273 = vld [vmem:[%s5 + $0x60] sm:$0xf]
  %v274 = vld [vmem:[%s5 + $0x64] sm:$0xf]
  %v275 = vld [vmem:[%s5 + $0x68] sm:$0xf]
  %v276 = vld [vmem:[%s5 + $0x6c] sm:$0xf]
  %v277 = vld [vmem:[%s5 + $0x70] sm:$0xf]
  %v278 = vld [vmem:[%s5 + $0x74] sm:$0xf]
  %v279 = vld [vmem:[%s5 + $0x78] sm:$0xf]
  %v280 = vld [vmem:[%s5 + $0x7c] sm:$0xf]
  %v281 = vld [vmem:[%s6] sm:$0x1]
  %v283 = vlaneseq
  %v284 = vshrl.u32 %v283, 7
  %v285 = vsub.s32 0, %v284
  %v286 = vrot.slane %v281, %v285
  %v289 = vunpack.c.l.b16 %v248
  %v290 = vunpack.c.h.b16 %v248
  %v291 = vpack.c.b16 %v289, %v289
  %v292 = vpack.c.b16 %v290, %v290
  %v327 = vunpack.c.l.b16 %v249
  %v328 = vunpack.c.l.b16 %v250
  %v329 = vunpack.c.l.b16 %v251
  %v330 = vunpack.c.l.b16 %v252
  %v331 = vunpack.c.l.b16 %v253
  %v332 = vunpack.c.l.b16 %v254
  %v333 = vunpack.c.l.b16 %v255
  %v334 = vunpack.c.l.b16 %v256
  %v335 = vunpack.c.l.b16 %v257
  %v336 = vunpack.c.l.b16 %v258
  %v337 = vunpack.c.l.b16 %v259
  %v338 = vunpack.c.l.b16 %v260
  %v339 = vunpack.c.l.b16 %v261
  %v340 = vunpack.c.l.b16 %v262
  %v341 = vunpack.c.l.b16 %v263
  %v342 = vunpack.c.l.b16 %v264
  %v343 = vunpack.c.l.b16 %v265
  %v344 = vunpack.c.l.b16 %v266
  %v345 = vunpack.c.l.b16 %v267
  %v346 = vunpack.c.l.b16 %v268
  %v347 = vunpack.c.l.b16 %v269
  %v348 = vunpack.c.l.b16 %v270
  %v349 = vunpack.c.l.b16 %v271
  %v350 = vunpack.c.l.b16 %v272
  %v351 = vunpack.c.l.b16 %v273
  %v352 = vunpack.c.l.b16 %v274
  %v353 = vunpack.c.l.b16 %v275
  %v354 = vunpack.c.l.b16 %v276
  %v355 = vunpack.c.l.b16 %v277
  %v356 = vunpack.c.l.b16 %v278
  %v357 = vunpack.c.l.b16 %v279
  %v358 = vunpack.c.l.b16 %v280
  %v359 = vpack.c.b16 %v328, %v327
  %v360 = vpack.c.b16 %v330, %v329
  %v361 = vpack.c.b16 %v332, %v331
  %v362 = vpack.c.b16 %v334, %v333
  %v363 = vpack.c.b16 %v336, %v335
  %v364 = vpack.c.b16 %v338, %v337
  %v365 = vpack.c.b16 %v340, %v339
  %v366 = vpack.c.b16 %v342, %v341
  %v367 = vpack.c.b16 %v344, %v343
  %v368 = vpack.c.b16 %v346, %v345
  %v369 = vpack.c.b16 %v348, %v347
  %v370 = vpack.c.b16 %v350, %v349
  %v371 = vpack.c.b16 %v352, %v351
  %v372 = vpack.c.b16 %v354, %v353
  %v373 = vpack.c.b16 %v356, %v355
  %v374 = vpack.c.b16 %v358, %v357
  %391 = vmatprep.subr.bf16.mxu0 0
  %392 = vmatpush1.bf16.msra.mxu0 %v366
  %393 = vmatprep.subr.bf16.mxu0 0
  %394 = vmatpush1.bf16.msra.mxu0 %v365
  %395 = vmatprep.subr.bf16.mxu0 0
  %396 = vmatpush1.bf16.msra.mxu0 %v364
  %397 = vmatprep.subr.bf16.mxu0 0
  %398 = vmatpush1.bf16.msra.mxu0 %v363
  %399 = vmatprep.subr.bf16.mxu0 0
  %400 = vmatpush1.bf16.msra.mxu0 %v362
  %401 = vmatprep.subr.bf16.mxu0 0
  %402 = vmatpush1.bf16.msra.mxu0 %v361
  %403 = vmatprep.subr.bf16.mxu0 0
  %404 = vmatpush1.bf16.msra.mxu0 %v360
  %405 = vmatprep.subr.bf16.mxu0 0
  %406 = vmatpush1.bf16.msra.mxu0 %v359
  %407 = vmatprep.subr.bf16.mxu0 0
  %408 = vmatpush2.bf16.msra.mxu0 %v374
  %409 = vmatprep.subr.bf16.mxu0 0
  %410 = vmatpush2.bf16.msra.mxu0 %v373
  %411 = vmatprep.subr.bf16.mxu0 0
  %412 = vmatpush2.bf16.msra.mxu0 %v372
  %413 = vmatprep.subr.bf16.mxu0 0
  %414 = vmatpush2.bf16.msra.mxu0 %v371
  %415 = vmatprep.subr.bf16.mxu0 0
  %416 = vmatpush2.bf16.msra.mxu0 %v370
  %417 = vmatprep.subr.bf16.mxu0 0
  %418 = vmatpush2.bf16.msra.mxu0 %v369
  %419 = vmatprep.subr.bf16.mxu0 0
  %420 = vmatpush2.bf16.msra.mxu0 %v368
  %421 = vmatprep.subr.bf16.mxu0 0
  %422 = vmatpush2.bf16.msra.mxu0 %v367
  %423 = vmatprep.mubr.bf16.mxu0 %v292
  %424 = vmatmul.mubr.bf16.gmra.mxu0 %v291
  %v425 = vpop.f32.mrf.mxu0
  %v426 = vadd.f32 %v286, %v425
  %v427 = vpop.f32.mrf.mxu0
  %v428 = vpop.f32.mrf.mxu0
  %v429 = vpop.f32.mrf.mxu0
  %430 = vdwg.mxu0
  %431 = vst [vmem:[%s7] sm:$0xff] %v426
  // Predicated region
  $region30: #{dqn_forward.1} parent=0 // pred_check
    _
  $region31: #{dqn_forward.1} parent=0 // pred_check_branch
    %433 = sbr.rel (0) target = $region33
  $region32: #{dqn_forward.1} parent=0 // pred_region
    _
  $region33: #{dqn_forward.1} parent=0 // pred_fallthru
    _
  // Predicated region
  $region34: #{dqn_forward.1} parent=0 // pred_check
    _
  $region35: #{dqn_forward.1} parent=0 // pred_check_branch
    %435 = sbr.rel (0) target = $region37
  $region36: #{dqn_forward.1} parent=0 // pred_region
    _
  $region37: #{dqn_forward.1} parent=0 // pred_fallthru
    _

</llo_original>
